<compile_context>
chip_gen: v6e
topology: v6e:2x2x1
jax: 0.10.0
libtpu: 0.0.40
codegen_flags: <defaults>
</compile_context>

<pallas_src>
import jax
import jax.numpy as jnp
from jax.experimental import pallas as pl
from jax.experimental.pallas import tpu as pltpu

H1 = 256
H2 = 128
_N_PACK_COLS = 8  # 5 used (w1, b1, b2, w3, b3), padded for neatness


def _mlp_kernel(x_ref, sp_ref, w2t_ref, o_ref):
    # x_ref: (1, TB) f32 | sp_ref: (256, 8) f32 packed small params
    # w2t_ref: (128, 256) bf16 | o_ref: (1, TB) f32
    x = x_ref[...]                                    # (1, TB)
    sp = sp_ref[...]                                  # (256, 8)
    w1c = sp[:, 0:1]                                  # (256, 1)
    b1c = sp[:, 1:2]                                  # (256, 1)
    b2c = sp[:H2, 2:3]                                # (128, 1)
    w3c = sp[:H2, 3:4]                                # (128, 1)
    b3 = sp[0:1, 4:5]                                 # (1, 1)

    # layer 1: K=1 -> rank-1 outer product on the VPU (keep the MXU free).
    h1 = jnp.maximum(w1c * x + b1c, 0.0)              # (256, TB) f32

    # layer 2: the only real matmul.  Batch on the MXU-N axis fills the
    # 256-wide v6e/v7x MXU; bf16 operands, f32 accumulation.
    h2 = jnp.dot(w2t_ref[...], h1.astype(jnp.bfloat16),
                 preferred_element_type=jnp.float32)  # (128, TB) f32
    h2 = jnp.maximum(h2 + b2c, 0.0)

    # layer 3: out features = 1 -> VPU multiply + sublane (XLU) reduction,
    # producing a lane-dense output row.
    out = jnp.sum(h2 * w3c, axis=0, keepdims=True) + b3   # (1, TB)
    o_ref[...] = out.astype(o_ref.dtype)


def _round_up(n, m):
    return ((n + m - 1) // m) * m


def regression_model_forward(x, params, *, tile_b=2048):
    """x: (B, 1) float32.  params: dict of (in,out) f32 weights and (1,out) biases."""
    w1, b1, w2, b2, w3, b3 = (params["w1"], params["b1"], params["w2"],
                              params["b2"], params["w3"], params["b3"])

    # --- layout plumbing (one-time, wrapper-side) ---------------------------
    # Layer-2 weight transposed so batch lands on the MXU-N axis; bf16 for a
    # single MXU pass per K-slice (f32 accumulate in-kernel).
    w2t = w2.T.astype(jnp.bfloat16)                   # (128, 256)

    # Pack the five tiny operands into ONE (256, 8) column slab -> single DMA.
    def _col(v):
        v = v.reshape(-1).astype(jnp.float32)
        return jnp.pad(v, (0, H1 - v.shape[0]))

    zeros = jnp.zeros((H1,), jnp.float32)
    sp = jnp.stack([_col(w1), _col(b1), _col(b2), _col(w3), _col(b3),
                    zeros, zeros, zeros], axis=1)     # (256, 8)

    # --- batch tiling --------------------------------------------------------
    B = x.shape[0]
    # Batch lives on the lane axis -> tiles must be multiples of 128.
    # Keep >= 2 grid steps whenever B allows it (v7x: shard the "parallel" axis
    # across both TensorCores); cap at `tile_b` (default 2048) so the ~0.35us
    # per-grid-step overhead stays a small fraction of step compute.
    if B <= 128:
        tb = 128
    else:
        tb = min(_round_up(tile_b, 128), _round_up((B + 1) // 2, 128))
    Bp = _round_up(B, tb)

    x_row = x.reshape(1, B).astype(jnp.float32)
    if Bp != B:
        x_row = jnp.pad(x_row, ((0, 0), (0, Bp - B)))

    out = pl.pallas_call(
        _mlp_kernel,
        out_shape=jax.ShapeDtypeStruct((1, Bp), jnp.float32),
        grid=(Bp // tb,),
        in_specs=[
            pl.BlockSpec((1, tb), lambda i: (0, i)),            # x: lane-dense, streamed
            pl.BlockSpec((H1, _N_PACK_COLS), lambda i: (0, 0)),  # packed small params
            pl.BlockSpec((H2, H1), lambda i: (0, 0)),            # w2^T (bf16), VMEM-resident
        ],
        out_specs=pl.BlockSpec((1, tb), lambda i: (0, i)),       # lane-dense output row
        compiler_params=pltpu.CompilerParams(
            dimension_semantics=("parallel",),
            vmem_limit_bytes=32 * 1024 * 1024,                   # safe on v5e/v6e/v7x
        ),
    )(x_row, sp, w2t)

    # Padded batch columns compute relu(b1)-derived garbage; sliced off here.
    return out[0, :B].reshape(B, 1)


def init_params(key):
    """Deterministic init matching PyTorch Linear default:
    U(-1/sqrt(fan_in), 1/sqrt(fan_in)) for both weights and biases."""
    ks = jax.random.split(key, 6)

    def uniform(k, shape, fan_in):
        bound = 1.0 / jnp.sqrt(jnp.float32(fan_in))
        return jax.random.uniform(k, shape, jnp.float32, -bound, bound)

    return {
        "w1": uniform(ks[0], (1, H1), 1),
        "b1": uniform(ks[1], (1, H1), 1),
        "w2": uniform(ks[2], (H1, H2), H1),
        "b2": uniform(ks[3], (1, H2), H1),
        "w3": uniform(ks[4], (H2, 1), H2),
        "b3": uniform(ks[5], (1, 1), H2),
    }


def _reference_forward(x, p):
    """Pure-JAX f32 reference (matches the PyTorch module's math)."""
    h1 = jnp.maximum(x @ p["w1"] + p["b1"], 0.0)
    h2 = jnp.maximum(h1 @ p["w2"] + p["b2"], 0.0)
    return h2 @ p["w3"] + p["b3"]


if __name__ == "__main__":
    key = jax.random.PRNGKey(0)
    pkey, xkey = jax.random.split(key)
    params = init_params(pkey)

    # small batch of scalar inputs in [-2pi, 2pi], shape (B, 1)
    B = 8
    x = jax.random.uniform(xkey, (B, 1), jnp.float32,
                           -2.0 * jnp.pi, 2.0 * jnp.pi)

    y = regression_model_forward(x, params)
    y = jax.block_until_ready(y)

    y_ref = _reference_forward(x, params)
    assert y.shape == (B, 1)
    # Tolerance loosened vs the all-f32 reference because the layer-2 matmul
    # runs with bf16 operands (f32 accumulation) on the MXU.
    assert jnp.allclose(y, y_ref, atol=5e-2, rtol=5e-2), "mismatch vs reference"

    print("KERNEL_OK")
</pallas_src>

<mosaic_0001>
module attributes {stable_mosaic.version = 11 : i64} {
  func.func @_mlp_kernel(%arg0: i32, %arg1: memref<1x128xf32, #tpu.memory_space<vmem>>, %arg2: memref<256x8xf32, #tpu.memory_space<vmem>>, %arg3: memref<128x256xbf16, #tpu.memory_space<vmem>>, %arg4: memref<1x128xf32, #tpu.memory_space<vmem>>) attributes {dimension_semantics = [#tpu.dimension_semantics<parallel>], iteration_bounds = array<i64: 1>, scalar_prefetch = 0 : i64, scratch_operands = 0 : i64, tpu.core_type = #tpu.core_type<tc>, window_params = [{transform_indices = @transform_0, window_bounds = array<i64: 1, 128>}, {pipeline_mode = #tpu.pipeline_mode<synchronous>, transform_indices = @transform_1, window_bounds = array<i64: 256, 8>}, {pipeline_mode = #tpu.pipeline_mode<synchronous>, transform_indices = @transform_2, window_bounds = array<i64: 128, 256>}, {transform_indices = @transform_3, window_bounds = array<i64: 1, 128>}]} {
    %c0 = arith.constant 0 : index
    %c0_0 = arith.constant 0 : index
    %0 = vector.load %arg1[%c0, %c0_0] : memref<1x128xf32, #tpu.memory_space<vmem>>, vector<1x128xf32>
    %c0_1 = arith.constant 0 : index
    %c0_2 = arith.constant 0 : index
    %1 = vector.load %arg2[%c0_1, %c0_2] : memref<256x8xf32, #tpu.memory_space<vmem>>, vector<256x8xf32>
    %2 = vector.extract_strided_slice %1 {offsets = [0, 0], sizes = [256, 1], strides = [1, 1]} : vector<256x8xf32> to vector<256x1xf32>
    %3 = vector.extract_strided_slice %1 {offsets = [0, 1], sizes = [256, 1], strides = [1, 1]} : vector<256x8xf32> to vector<256x1xf32>
    %4 = vector.extract_strided_slice %1 {offsets = [0, 2], sizes = [128, 1], strides = [1, 1]} : vector<256x8xf32> to vector<128x1xf32>
    %5 = vector.extract_strided_slice %1 {offsets = [0, 3], sizes = [128, 1], strides = [1, 1]} : vector<256x8xf32> to vector<128x1xf32>
    %6 = vector.extract_strided_slice %1 {offsets = [0, 4], sizes = [1, 1], strides = [1, 1]} : vector<256x8xf32> to vector<1x1xf32>
    %7 = vector.broadcast %2 : vector<256x1xf32> to vector<256x128xf32>
    %8 = vector.broadcast %0 : vector<1x128xf32> to vector<256x128xf32>
    %9 = arith.mulf %7, %8 : vector<256x128xf32>
    %10 = vector.broadcast %3 : vector<256x1xf32> to vector<256x128xf32>
    %11 = arith.addf %9, %10 : vector<256x128xf32>
    %cst = arith.constant 0.000000e+00 : f32
    %12 = vector.broadcast %cst : f32 to vector<256x128xf32>
    %13 = arith.maximumf %11, %12 : vector<256x128xf32>
    %c0_3 = arith.constant 0 : index
    %c0_4 = arith.constant 0 : index
    %14 = vector.load %arg3[%c0_3, %c0_4] : memref<128x256xbf16, #tpu.memory_space<vmem>>, vector<128x256xbf16>
    %15 = arith.truncf %13 : vector<256x128xf32> to vector<256x128xbf16>
    %cst_5 = arith.constant dense<0.000000e+00> : vector<128x128xf32>
    %16 = tpu.matmul %14, %15, %cst_5 {dimension_numbers = #tpu.dot_dimension_numbers<[1], [0], [0], [1], [0, 0, 1, 1], [], []>} : vector<128x256xbf16>, vector<256x128xbf16>, vector<128x128xf32> -> vector<128x128xf32>
    %17 = vector.broadcast %4 : vector<128x1xf32> to vector<128x128xf32>
    %18 = arith.addf %16, %17 : vector<128x128xf32>
    %cst_6 = arith.constant 0.000000e+00 : f32
    %19 = vector.broadcast %cst_6 : f32 to vector<128x128xf32>
    %20 = arith.maximumf %18, %19 : vector<128x128xf32>
    %21 = vector.broadcast %5 : vector<128x1xf32> to vector<128x128xf32>
    %22 = arith.mulf %20, %21 : vector<128x128xf32>
    %cst_7 = arith.constant dense<0.000000e+00> : vector<128xf32>
    %23 = vector.multi_reduction <add>, %22, %cst_7 [0] : vector<128x128xf32> to vector<128xf32>
    %24 = vector.shape_cast %23 : vector<128xf32> to vector<1x128xf32>
    %25 = vector.broadcast %6 : vector<1x1xf32> to vector<1x128xf32>
    %26 = arith.addf %24, %25 : vector<1x128xf32>
    %c0_8 = arith.constant 0 : index
    %c0_9 = arith.constant 0 : index
    %27 = vector.load %arg4[%c0_8, %c0_9] : memref<1x128xf32, #tpu.memory_space<vmem>>, vector<1x128xf32>
    tpu.vector_store %arg4[%c0_8, %c0_9], %26 {strides = array<i32>} : memref<1x128xf32, #tpu.memory_space<vmem>>, vector<1x128xf32>,
    return
  }
  func.func @transform_0(%arg0: i32) -> (i32, i32) {
    %c0_i32 = arith.constant 0 : i32
    %c0_i32_0 = arith.constant 0 : i32
    return %c0_i32, %arg0 : i32, i32
  }
  func.func @transform_1(%arg0: i32) -> (i32, i32) {
    %c0_i32 = arith.constant 0 : i32
    %c0_i32_0 = arith.constant 0 : i32
    %c0_i32_1 = arith.constant 0 : i32
    return %c0_i32, %c0_i32_0 : i32, i32
  }
  func.func @transform_2(%arg0: i32) -> (i32, i32) {
    %c0_i32 = arith.constant 0 : i32
    %c0_i32_0 = arith.constant 0 : i32
    %c0_i32_1 = arith.constant 0 : i32
    return %c0_i32, %c0_i32_0 : i32, i32
  }
  func.func @transform_3(%arg0: i32) -> (i32, i32) {
    %c0_i32 = arith.constant 0 : i32
    %c0_i32_0 = arith.constant 0 : i32
    return %c0_i32, %arg0 : i32, i32
  }
}

</mosaic_0001>

<llo_original>
// kernel: tpu_custom_call.1
$region0: #{tpu_custom_call.1}
  #allocation0 [shape = 'u32[]', space=smem, size = 0x4, offset = 0x4, fixed_abs, tag = 'smem constant byte address 0x4 - core index']
  #allocation1 [shape = 'u32[144,128]{1,0:T(1,128)}', space=vmem, size = 0x12000, scoped, tag = 'internal scratch']
  %s0 = inlined_call_operand.vmem [shape: f32[1,128], index: 0, kind: input, shape index: {}]
  %s1 = inlined_call_operand.vmem [shape: f32[256,8], index: 1, kind: input, shape index: {}]
  %s2 = inlined_call_operand.vmem [shape: bf16[128,256], index: 2, kind: input, shape index: {}]
  %s3 = inlined_call_operand.hbm [shape: f32[1,128], index: 3, kind: output, shape index: {}]
  %s4 = sld [smem:[#allocation0]]
  $region22: #{tpu_custom_call.1} parent=0
    _
  %s6 = ssub.s32 1, %s4
  %s7 = scalar_select 0, %s6, %s4
  $region1: #{tpu_custom_call.1} parent=0
    #allocation2 [shape = 'u8[512]{0}', space=vmem, size = 0x400, scoped, tag = 'output window, operand 0, single buffered']
    #allocation3 [shape = 's32[1]{0}', space=sflag, size = 0x4, scoped, tag = 'scoped memory for tpu_custom_call.1']
    %8 = vsyncpa [#allocation3], 0
    // Predicated region
    $region2: #{tpu_custom_call.1} parent=1 // pred_check
      _
    $region3: #{tpu_custom_call.1} parent=1 // pred_check_branch
      %10 = sbr.rel (0) target = $region5
    $region4: #{tpu_custom_call.1} parent=1 // pred_region
      _
    $region5: #{tpu_custom_call.1} parent=1 // pred_fallthru
      _
    // Predicated region
    $region6: #{tpu_custom_call.1} parent=1 // pred_check
      _
    $region7: #{tpu_custom_call.1} parent=1 // pred_check_branch
      %12 = sbr.rel (0) target = $region9
    $region8: #{tpu_custom_call.1} parent=1 // pred_region
      _
    $region9: #{tpu_custom_call.1} parent=1 // pred_fallthru
      _
    // Predicated region
    $region10: #{tpu_custom_call.1} parent=1 // pred_check
      _
    $region11: #{tpu_custom_call.1} parent=1 // pred_check_branch
      %14 = sbr.rel (0) target = $region13
    $region12: #{tpu_custom_call.1} parent=1 // pred_region
      _
    $region13: #{tpu_custom_call.1} parent=1 // pred_fallthru
      _
    %v16 = vld [vmem:[%s0] sm:$0x1]
    %v17 = vld [vmem:[%s1] sm:$0xff]
    %v18 = vld [vmem:[%s1 + $0x8] sm:$0xff]
    %v19 = vld [vmem:[%s1 + $0x10] sm:$0xff]
    %v20 = vld [vmem:[%s1 + $0x18] sm:$0xff]
    %v21 = vld [vmem:[%s1 + $0x20] sm:$0xff]
    %v22 = vld [vmem:[%s1 + $0x28] sm:$0xff]
    %v23 = vld [vmem:[%s1 + $0x30] sm:$0xff]
    %v24 = vld [vmem:[%s1 + $0x38] sm:$0xff]
    %v25 = vld [vmem:[%s1 + $0x40] sm:$0xff]
    %v26 = vld [vmem:[%s1 + $0x48] sm:$0xff]
    %v27 = vld [vmem:[%s1 + $0x50] sm:$0xff]
    %v28 = vld [vmem:[%s1 + $0x58] sm:$0xff]
    %v29 = vld [vmem:[%s1 + $0x60] sm:$0xff]
    %v30 = vld [vmem:[%s1 + $0x68] sm:$0xff]
    %v31 = vld [vmem:[%s1 + $0x70] sm:$0xff]
    %v32 = vld [vmem:[%s1 + $0x78] sm:$0xff]
    %v33 = vld [vmem:[%s1 + $0x80] sm:$0xff]
    %v34 = vld [vmem:[%s1 + $0x88] sm:$0xff]
    %v35 = vld [vmem:[%s1 + $0x90] sm:$0xff]
    %v36 = vld [vmem:[%s1 + $0x98] sm:$0xff]
    %v37 = vld [vmem:[%s1 + $0xa0] sm:$0xff]
    %v38 = vld [vmem:[%s1 + $0xa8] sm:$0xff]
    %v39 = vld [vmem:[%s1 + $0xb0] sm:$0xff]
    %v40 = vld [vmem:[%s1 + $0xb8] sm:$0xff]
    %v41 = vld [vmem:[%s1 + $0xc0] sm:$0xff]
    %v42 = vld [vmem:[%s1 + $0xc8] sm:$0xff]
    %v43 = vld [vmem:[%s1 + $0xd0] sm:$0xff]
    %v44 = vld [vmem:[%s1 + $0xd8] sm:$0xff]
    %v45 = vld [vmem:[%s1 + $0xe0] sm:$0xff]
    %v46 = vld [vmem:[%s1 + $0xe8] sm:$0xff]
    %v47 = vld [vmem:[%s1 + $0xf0] sm:$0xff]
    %v48 = vld [vmem:[%s1 + $0xf8] sm:$0xff]
    %50 = vset.pattern.permute.xlu0 0
    %51 = vperm.xlu0 %50, %v17
    %v52 = vpop.permute.xlu0 %51
    %55 = vset.pattern.permute.xlu0 0
    %56 = vperm.xlu0 %55, %v18
    %v57 = vpop.permute.xlu0 %56
    %60 = vset.pattern.permute.xlu0 0
    %61 = vperm.xlu0 %60, %v19
    %v62 = vpop.permute.xlu0 %61
    %65 = vset.pattern.permute.xlu0 0
    %66 = vperm.xlu0 %65, %v20
    %v67 = vpop.permute.xlu0 %66
    %70 = vset.pattern.permute.xlu0 0
    %71 = vperm.xlu0 %70, %v21
    %v72 = vpop.permute.xlu0 %71
    %75 = vset.pattern.permute.xlu0 0
    %76 = vperm.xlu0 %75, %v22
    %v77 = vpop.permute.xlu0 %76
    %80 = vset.pattern.permute.xlu0 0
    %81 = vperm.xlu0 %80, %v23
    %v82 = vpop.permute.xlu0 %81
    %85 = vset.pattern.permute.xlu0 0
    %86 = vperm.xlu0 %85, %v24
    %v87 = vpop.permute.xlu0 %86
    %90 = vset.pattern.permute.xlu0 0
    %91 = vperm.xlu0 %90, %v25
    %v92 = vpop.permute.xlu0 %91
    %95 = vset.pattern.permute.xlu0 0
    %96 = vperm.xlu0 %95, %v26
    %v97 = vpop.permute.xlu0 %96
    %100 = vset.pattern.permute.xlu0 0
    %101 = vperm.xlu0 %100, %v27
    %v102 = vpop.permute.xlu0 %101
    %105 = vset.pattern.permute.xlu0 0
    %106 = vperm.xlu0 %105, %v28
    %v107 = vpop.permute.xlu0 %106
    %110 = vset.pattern.permute.xlu0 0
    %111 = vperm.xlu0 %110, %v29
    %v112 = vpop.permute.xlu0 %111
    %115 = vset.pattern.permute.xlu0 0
    %116 = vperm.xlu0 %115, %v30
    %v117 = vpop.permute.xlu0 %116
    %120 = vset.pattern.permute.xlu0 0
    %121 = vperm.xlu0 %120, %v31
    %v122 = vpop.permute.xlu0 %121
    %125 = vset.pattern.permute.xlu0 0
    %126 = vperm.xlu0 %125, %v32
    %v127 = vpop.permute.xlu0 %126
    %130 = vset.pattern.permute.xlu0 0
    %131 = vperm.xlu0 %130, %v33
    %v132 = vpop.permute.xlu0 %131
    %135 = vset.pattern.permute.xlu0 0
    %136 = vperm.xlu0 %135, %v34
    %v137 = vpop.permute.xlu0 %136
    %140 = vset.pattern.permute.xlu0 0
    %141 = vperm.xlu0 %140, %v35
    %v142 = vpop.permute.xlu0 %141
    %145 = vset.pattern.permute.xlu0 0
    %146 = vperm.xlu0 %145, %v36
    %v147 = vpop.permute.xlu0 %146
    %150 = vset.pattern.permute.xlu0 0
    %151 = vperm.xlu0 %150, %v37
    %v152 = vpop.permute.xlu0 %151
    %155 = vset.pattern.permute.xlu0 0
    %156 = vperm.xlu0 %155, %v38
    %v157 = vpop.permute.xlu0 %156
    %160 = vset.pattern.permute.xlu0 0
    %161 = vperm.xlu0 %160, %v39
    %v162 = vpop.permute.xlu0 %161
    %165 = vset.pattern.permute.xlu0 0
    %166 = vperm.xlu0 %165, %v40
    %v167 = vpop.permute.xlu0 %166
    %170 = vset.pattern.permute.xlu0 0
    %171 = vperm.xlu0 %170, %v41
    %v172 = vpop.permute.xlu0 %171
    %175 = vset.pattern.permute.xlu0 0
    %176 = vperm.xlu0 %175, %v42
    %v177 = vpop.permute.xlu0 %176
    %180 = vset.pattern.permute.xlu0 0
    %181 = vperm.xlu0 %180, %v43
    %v182 = vpop.permute.xlu0 %181
    %185 = vset.pattern.permute.xlu0 0
    %186 = vperm.xlu0 %185, %v44
    %v187 = vpop.permute.xlu0 %186
    %190 = vset.pattern.permute.xlu0 0
    %191 = vperm.xlu0 %190, %v45
    %v192 = vpop.permute.xlu0 %191
    %195 = vset.pattern.permute.xlu0 0
    %196 = vperm.xlu0 %195, %v46
    %v197 = vpop.permute.xlu0 %196
    %200 = vset.pattern.permute.xlu0 0
    %201 = vperm.xlu0 %200, %v47
    %v202 = vpop.permute.xlu0 %201
    %205 = vset.pattern.permute.xlu0 0
    %206 = vperm.xlu0 %205, %v48
    %v207 = vpop.permute.xlu0 %206
    %v210 = vlaneseq
    %v211 = vshrl.u32 %v210, 7
    %v212 = vsub.s32 0, %v211
    %v213 = vrot.slane %v16, %v212
    %v215 = vmul.f32 %v52, %v213
    %v216 = vmul.f32 %v57, %v213
    %v217 = vmul.f32 %v62, %v213
    %v218 = vmul.f32 %v67, %v213
    %v219 = vmul.f32 %v72, %v213
    %v220 = vmul.f32 %v77, %v213
    %v221 = vmul.f32 %v82, %v213
    %v222 = vmul.f32 %v87, %v213
    %v223 = vmul.f32 %v92, %v213
    %v224 = vmul.f32 %v97, %v213
    %v225 = vmul.f32 %v102, %v213
    %v226 = vmul.f32 %v107, %v213
    %v227 = vmul.f32 %v112, %v213
    %v228 = vmul.f32 %v117, %v213
    %v229 = vmul.f32 %v122, %v213
    %v230 = vmul.f32 %v127, %v213
    %v231 = vmul.f32 %v132, %v213
    %v232 = vmul.f32 %v137, %v213
    %v233 = vmul.f32 %v142, %v213
    %v234 = vmul.f32 %v147, %v213
    %v235 = vmul.f32 %v152, %v213
    %v236 = vmul.f32 %v157, %v213
    %v237 = vmul.f32 %v162, %v213
    %v238 = vmul.f32 %v167, %v213
    %v239 = vmul.f32 %v172, %v213
    %v240 = vmul.f32 %v177, %v213
    %v241 = vmul.f32 %v182, %v213
    %v242 = vmul.f32 %v187, %v213
    %v243 = vmul.f32 %v192, %v213
    %v244 = vmul.f32 %v197, %v213
    %v245 = vmul.f32 %v202, %v213
    %v246 = vmul.f32 %v207, %v213
    %247 = vset.pattern.permute.xlu0 1
    %248 = vperm.xlu0 %247, %v17
    %v249 = vpop.permute.xlu0 %248
    %251 = vset.pattern.permute.xlu0 1
    %252 = vperm.xlu0 %251, %v18
    %v253 = vpop.permute.xlu0 %252
    %255 = vset.pattern.permute.xlu0 1
    %256 = vperm.xlu0 %255, %v19
    %v257 = vpop.permute.xlu0 %256
    %259 = vset.pattern.permute.xlu0 1
    %260 = vperm.xlu0 %259, %v20
    %v261 = vpop.permute.xlu0 %260
    %263 = vset.pattern.permute.xlu0 1
    %264 = vperm.xlu0 %263, %v21
    %v265 = vpop.permute.xlu0 %264
    %267 = vset.pattern.permute.xlu0 1
    %268 = vperm.xlu0 %267, %v22
    %v269 = vpop.permute.xlu0 %268
    %271 = vset.pattern.permute.xlu0 1
    %272 = vperm.xlu0 %271, %v23
    %v273 = vpop.permute.xlu0 %272
    %275 = vset.pattern.permute.xlu0 1
    %276 = vperm.xlu0 %275, %v24
    %v277 = vpop.permute.xlu0 %276
    %279 = vset.pattern.permute.xlu0 1
    %280 = vperm.xlu0 %279, %v25
    %v281 = vpop.permute.xlu0 %280
    %283 = vset.pattern.permute.xlu0 1
    %284 = vperm.xlu0 %283, %v26
    %v285 = vpop.permute.xlu0 %284
    %287 = vset.pattern.permute.xlu0 1
    %288 = vperm.xlu0 %287, %v27
    %v289 = vpop.permute.xlu0 %288
    %291 = vset.pattern.permute.xlu0 1
    %292 = vperm.xlu0 %291, %v28
    %v293 = vpop.permute.xlu0 %292
    %295 = vset.pattern.permute.xlu0 1
    %296 = vperm.xlu0 %295, %v29
    %v297 = vpop.permute.xlu0 %296
    %299 = vset.pattern.permute.xlu0 1
    %300 = vperm.xlu0 %299, %v30
    %v301 = vpop.permute.xlu0 %300
    %303 = vset.pattern.permute.xlu0 1
    %304 = vperm.xlu0 %303, %v31
    %v305 = vpop.permute.xlu0 %304
    %307 = vset.pattern.permute.xlu0 1
    %308 = vperm.xlu0 %307, %v32
    %v309 = vpop.permute.xlu0 %308
    %311 = vset.pattern.permute.xlu0 1
    %312 = vperm.xlu0 %311, %v33
    %v313 = vpop.permute.xlu0 %312
    %315 = vset.pattern.permute.xlu0 1
    %316 = vperm.xlu0 %315, %v34
    %v317 = vpop.permute.xlu0 %316
    %319 = vset.pattern.permute.xlu0 1
    %320 = vperm.xlu0 %319, %v35
    %v321 = vpop.permute.xlu0 %320
    %323 = vset.pattern.permute.xlu0 1
    %324 = vperm.xlu0 %323, %v36
    %v325 = vpop.permute.xlu0 %324
    %327 = vset.pattern.permute.xlu0 1
    %328 = vperm.xlu0 %327, %v37
    %v329 = vpop.permute.xlu0 %328
    %331 = vset.pattern.permute.xlu0 1
    %332 = vperm.xlu0 %331, %v38
    %v333 = vpop.permute.xlu0 %332
    %335 = vset.pattern.permute.xlu0 1
    %336 = vperm.xlu0 %335, %v39
    %v337 = vpop.permute.xlu0 %336
    %339 = vset.pattern.permute.xlu0 1
    %340 = vperm.xlu0 %339, %v40
    %v341 = vpop.permute.xlu0 %340
    %343 = vset.pattern.permute.xlu0 1
    %344 = vperm.xlu0 %343, %v41
    %v345 = vpop.permute.xlu0 %344
    %347 = vset.pattern.permute.xlu0 1
    %348 = vperm.xlu0 %347, %v42
    %v349 = vpop.permute.xlu0 %348
    %351 = vset.pattern.permute.xlu0 1
    %352 = vperm.xlu0 %351, %v43
    %v353 = vpop.permute.xlu0 %352
    %355 = vset.pattern.permute.xlu0 1
    %356 = vperm.xlu0 %355, %v44
    %v357 = vpop.permute.xlu0 %356
    %359 = vset.pattern.permute.xlu0 1
    %360 = vperm.xlu0 %359, %v45
    %v361 = vpop.permute.xlu0 %360
    %363 = vset.pattern.permute.xlu0 1
    %364 = vperm.xlu0 %363, %v46
    %v365 = vpop.permute.xlu0 %364
    %367 = vset.pattern.permute.xlu0 1
    %368 = vperm.xlu0 %367, %v47
    %v369 = vpop.permute.xlu0 %368
    %371 = vset.pattern.permute.xlu0 1
    %372 = vperm.xlu0 %371, %v48
    %v373 = vpop.permute.xlu0 %372
    %v375 = vadd.f32 %v215, %v249
    %v376 = vadd.f32 %v216, %v253
    %v377 = vadd.f32 %v217, %v257
    %v378 = vadd.f32 %v218, %v261
    %v379 = vadd.f32 %v219, %v265
    %v380 = vadd.f32 %v220, %v269
    %v381 = vadd.f32 %v221, %v273
    %v382 = vadd.f32 %v222, %v277
    %v383 = vadd.f32 %v223, %v281
    %v384 = vadd.f32 %v224, %v285
    %v385 = vadd.f32 %v225, %v289
    %v386 = vadd.f32 %v226, %v293
    %v387 = vadd.f32 %v227, %v297
    %v388 = vadd.f32 %v228, %v301
    %v389 = vadd.f32 %v229, %v305
    %v390 = vadd.f32 %v230, %v309
    %v391 = vadd.f32 %v231, %v313
    %v392 = vadd.f32 %v232, %v317
    %v393 = vadd.f32 %v233, %v321
    %v394 = vadd.f32 %v234, %v325
    %v395 = vadd.f32 %v235, %v329
    %v396 = vadd.f32 %v236, %v333
    %v397 = vadd.f32 %v237, %v337
    %v398 = vadd.f32 %v238, %v341
    %v399 = vadd.f32 %v239, %v345
    %v400 = vadd.f32 %v240, %v349
    %v401 = vadd.f32 %v241, %v353
    %v402 = vadd.f32 %v242, %v357
    %v403 = vadd.f32 %v243, %v361
    %v404 = vadd.f32 %v244, %v365
    %v405 = vadd.f32 %v245, %v369
    %v406 = vadd.f32 %v246, %v373
    %v407 = vmax.f32 %v375, 0.0
    %v408 = vmax.f32 %v376, 0.0
    %v409 = vmax.f32 %v377, 0.0
    %v410 = vmax.f32 %v378, 0.0
    %v411 = vmax.f32 %v379, 0.0
    %v412 = vmax.f32 %v380, 0.0
    %v413 = vmax.f32 %v381, 0.0
    %v414 = vmax.f32 %v382, 0.0
    %v415 = vmax.f32 %v383, 0.0
    %v416 = vmax.f32 %v384, 0.0
    %v417 = vmax.f32 %v385, 0.0
    %v418 = vmax.f32 %v386, 0.0
    %v419 = vmax.f32 %v387, 0.0
    %v420 = vmax.f32 %v388, 0.0
    %v421 = vmax.f32 %v389, 0.0
    %v422 = vmax.f32 %v390, 0.0
    %v423 = vmax.f32 %v391, 0.0
    %v424 = vmax.f32 %v392, 0.0
    %v425 = vmax.f32 %v393, 0.0
    %v426 = vmax.f32 %v394, 0.0
    %v427 = vmax.f32 %v395, 0.0
    %v428 = vmax.f32 %v396, 0.0
    %v429 = vmax.f32 %v397, 0.0
    %v430 = vmax.f32 %v398, 0.0
    %v431 = vmax.f32 %v399, 0.0
    %v432 = vmax.f32 %v400, 0.0
    %v433 = vmax.f32 %v401, 0.0
    %v434 = vmax.f32 %v402, 0.0
    %v435 = vmax.f32 %v403, 0.0
    %v436 = vmax.f32 %v404, 0.0
    %v437 = vmax.f32 %v405, 0.0
    %v438 = vmax.f32 %v406, 0.0
    %v439 = vld [vmem:[%s2] sm:$0xff]
    %v440 = vld [vmem:[%s2 + $0x8] sm:$0xff]
    %v441 = vld [vmem:[%s2 + $0x10] sm:$0xff]
    %v442 = vld [vmem:[%s2 + $0x18] sm:$0xff]
    %v443 = vld [vmem:[%s2 + $0x20] sm:$0xff]
    %v444 = vld [vmem:[%s2 + $0x28] sm:$0xff]
    %v445 = vld [vmem:[%s2 + $0x30] sm:$0xff]
    %v446 = vld [vmem:[%s2 + $0x38] sm:$0xff]
    %v447 = vld [vmem:[%s2 + $0x40] sm:$0xff]
    %v448 = vld [vmem:[%s2 + $0x48] sm:$0xff]
    %v449 = vld [vmem:[%s2 + $0x50] sm:$0xff]
    %v450 = vld [vmem:[%s2 + $0x58] sm:$0xff]
    %v451 = vld [vmem:[%s2 + $0x60] sm:$0xff]
    %v452 = vld [vmem:[%s2 + $0x68] sm:$0xff]
    %v453 = vld [vmem:[%s2 + $0x70] sm:$0xff]
    %v454 = vld [vmem:[%s2 + $0x78] sm:$0xff]
    %v455 = vpack.c.bf16 %v408, %v407
    %v456 = vpack.c.bf16 %v410, %v409
    %v457 = vpack.c.bf16 %v412, %v411
    %v458 = vpack.c.bf16 %v414, %v413
    %v459 = vpack.c.bf16 %v416, %v415
    %v460 = vpack.c.bf16 %v418, %v417
    %v461 = vpack.c.bf16 %v420, %v419
    %v462 = vpack.c.bf16 %v422, %v421
    %v463 = vpack.c.bf16 %v424, %v423
    %v464 = vpack.c.bf16 %v426, %v425
    %v465 = vpack.c.bf16 %v428, %v427
    %v466 = vpack.c.bf16 %v430, %v429
    %v467 = vpack.c.bf16 %v432, %v431
    %v468 = vpack.c.bf16 %v434, %v433
    %v469 = vpack.c.bf16 %v436, %v435
    %v470 = vpack.c.bf16 %v438, %v437
    %471 = vset.pattern.permute.xlu0 2
    %472 = vperm.xlu0 %471, %v17
    %v473 = vpop.permute.xlu0 %472
    %475 = vset.pattern.permute.xlu0 2
    %476 = vperm.xlu0 %475, %v18
    %v477 = vpop.permute.xlu0 %476
    %479 = vset.pattern.permute.xlu0 2
    %480 = vperm.xlu0 %479, %v19
    %v481 = vpop.permute.xlu0 %480
    %483 = vset.pattern.permute.xlu0 2
    %484 = vperm.xlu0 %483, %v20
    %v485 = vpop.permute.xlu0 %484
    %487 = vset.pattern.permute.xlu0 2
    %488 = vperm.xlu0 %487, %v21
    %v489 = vpop.permute.xlu0 %488
    %491 = vset.pattern.permute.xlu0 2
    %492 = vperm.xlu0 %491, %v22
    %v493 = vpop.permute.xlu0 %492
    %495 = vset.pattern.permute.xlu0 2
    %496 = vperm.xlu0 %495, %v23
    %v497 = vpop.permute.xlu0 %496
    %499 = vset.pattern.permute.xlu0 2
    %500 = vperm.xlu0 %499, %v24
    %v501 = vpop.permute.xlu0 %500
    %503 = vset.pattern.permute.xlu0 2
    %504 = vperm.xlu0 %503, %v25
    %v505 = vpop.permute.xlu0 %504
    %507 = vset.pattern.permute.xlu0 2
    %508 = vperm.xlu0 %507, %v26
    %v509 = vpop.permute.xlu0 %508
    %511 = vset.pattern.permute.xlu0 2
    %512 = vperm.xlu0 %511, %v27
    %v513 = vpop.permute.xlu0 %512
    %515 = vset.pattern.permute.xlu0 2
    %516 = vperm.xlu0 %515, %v28
    %v517 = vpop.permute.xlu0 %516
    %519 = vset.pattern.permute.xlu0 2
    %520 = vperm.xlu0 %519, %v29
    %v521 = vpop.permute.xlu0 %520
    %523 = vset.pattern.permute.xlu0 2
    %524 = vperm.xlu0 %523, %v30
    %v525 = vpop.permute.xlu0 %524
    %527 = vset.pattern.permute.xlu0 2
    %528 = vperm.xlu0 %527, %v31
    %v529 = vpop.permute.xlu0 %528
    %531 = vset.pattern.permute.xlu0 2
    %532 = vperm.xlu0 %531, %v32
    %v533 = vpop.permute.xlu0 %532
    %v551 = vunpack.c.l.b16 %v439
    %v552 = vunpack.c.h.b16 %v439
    %v553 = vunpack.c.l.b16 %v440
    %v554 = vunpack.c.h.b16 %v440
    %v555 = vunpack.c.l.b16 %v441
    %v556 = vunpack.c.h.b16 %v441
    %v557 = vunpack.c.l.b16 %v442
    %v558 = vunpack.c.h.b16 %v442
    %v559 = vunpack.c.l.b16 %v443
    %v560 = vunpack.c.h.b16 %v443
    %v561 = vunpack.c.l.b16 %v444
    %v562 = vunpack.c.h.b16 %v444
    %v563 = vunpack.c.l.b16 %v445
    %v564 = vunpack.c.h.b16 %v445
    %v565 = vunpack.c.l.b16 %v446
    %v566 = vunpack.c.h.b16 %v446
    %v567 = vunpack.c.l.b16 %v447
    %v568 = vunpack.c.h.b16 %v447
    %v569 = vunpack.c.l.b16 %v448
    %v570 = vunpack.c.h.b16 %v448
    %v571 = vunpack.c.l.b16 %v449
    %v572 = vunpack.c.h.b16 %v449
    %v573 = vunpack.c.l.b16 %v450
    %v574 = vunpack.c.h.b16 %v450
    %v575 = vunpack.c.l.b16 %v451
    %v576 = vunpack.c.h.b16 %v451
    %v577 = vunpack.c.l.b16 %v452
    %v578 = vunpack.c.h.b16 %v452
    %v579 = vunpack.c.l.b16 %v453
    %v580 = vunpack.c.h.b16 %v453
    %v581 = vunpack.c.l.b16 %v454
    %v582 = vunpack.c.h.b16 %v454
    %v583 = vpack.c.b16 %v553, %v551
    %v584 = vpack.c.b16 %v554, %v552
    %v585 = vpack.c.b16 %v557, %v555
    %v586 = vpack.c.b16 %v558, %v556
    %v587 = vpack.c.b16 %v561, %v559
    %v588 = vpack.c.b16 %v562, %v560
    %v589 = vpack.c.b16 %v565, %v563
    %v590 = vpack.c.b16 %v566, %v564
    %v591 = vpack.c.b16 %v569, %v567
    %v592 = vpack.c.b16 %v570, %v568
    %v593 = vpack.c.b16 %v573, %v571
    %v594 = vpack.c.b16 %v574, %v572
    %v595 = vpack.c.b16 %v577, %v575
    %v596 = vpack.c.b16 %v578, %v576
    %v597 = vpack.c.b16 %v581, %v579
    %v598 = vpack.c.b16 %v582, %v580
    %615 = vmatprep.subr.bf16.mxu0 0
    %616 = vmatpush1.bf16.msra.mxu0 %v462
    %617 = vmatprep.subr.bf16.mxu0 0
    %618 = vmatpush1.bf16.msra.mxu0 %v461
    %619 = vmatprep.subr.bf16.mxu0 0
    %620 = vmatpush1.bf16.msra.mxu0 %v460
    %621 = vmatprep.subr.bf16.mxu0 0
    %622 = vmatpush1.bf16.msra.mxu0 %v459
    %623 = vmatprep.subr.bf16.mxu0 0
    %624 = vmatpush1.bf16.msra.mxu0 %v458
    %625 = vmatprep.subr.bf16.mxu0 0
    %626 = vmatpush1.bf16.msra.mxu0 %v457
    %627 = vmatprep.subr.bf16.mxu0 0
    %628 = vmatpush1.bf16.msra.mxu0 %v456
    %629 = vmatprep.subr.bf16.mxu0 0
    %630 = vmatpush1.bf16.msra.mxu0 %v455
    %631 = vmatprep.subr.bf16.mxu0 0
    %632 = vmatpush2.bf16.msra.mxu0 %v470
    %633 = vmatprep.subr.bf16.mxu0 0
    %634 = vmatpush2.bf16.msra.mxu0 %v469
    %635 = vmatprep.subr.bf16.mxu0 0
    %636 = vmatpush2.bf16.msra.mxu0 %v468
    %637 = vmatprep.subr.bf16.mxu0 0
    %638 = vmatpush2.bf16.msra.mxu0 %v467
    %639 = vmatprep.subr.bf16.mxu0 0
    %640 = vmatpush2.bf16.msra.mxu0 %v466
    %641 = vmatprep.subr.bf16.mxu0 0
    %642 = vmatpush2.bf16.msra.mxu0 %v465
    %643 = vmatprep.subr.bf16.mxu0 0
    %644 = vmatpush2.bf16.msra.mxu0 %v464
    %645 = vmatprep.subr.bf16.mxu0 0
    %646 = vmatpush2.bf16.msra.mxu0 %v463
    %647 = vmatprep.mubr.bf16.mxu0 %v584
    %648 = vmatmul.mubr.bf16.gmra.mxu0 %v583
    %v649 = vpop.f32.mrf.mxu0
    %v650 = vadd.f32 %v473, %v649
    %v651 = vpop.f32.mrf.mxu0
    %v652 = vpop.f32.mrf.mxu0
    %v653 = vadd.f32 %v477, %v652
    %v654 = vpop.f32.mrf.mxu0
    %655 = vmatprep.mubr.bf16.mxu0 %v586
    %656 = vmatmul.mubr.bf16.gmra.mxu0 %v585
    %v657 = vpop.f32.mrf.mxu0
    %v658 = vadd.f32 %v481, %v657
    %v659 = vpop.f32.mrf.mxu0
    %v660 = vpop.f32.mrf.mxu0
    %v661 = vadd.f32 %v485, %v660
    %v662 = vpop.f32.mrf.mxu0
    %663 = vmatprep.mubr.bf16.mxu0 %v588
    %664 = vmatmul.mubr.bf16.gmra.mxu0 %v587
    %v665 = vpop.f32.mrf.mxu0
    %v666 = vadd.f32 %v489, %v665
    %v667 = vpop.f32.mrf.mxu0
    %v668 = vpop.f32.mrf.mxu0
    %v669 = vadd.f32 %v493, %v668
    %v670 = vpop.f32.mrf.mxu0
    %671 = vmatprep.mubr.bf16.mxu0 %v590
    %672 = vmatmul.mubr.bf16.gmra.mxu0 %v589
    %v673 = vpop.f32.mrf.mxu0
    %v674 = vadd.f32 %v497, %v673
    %v675 = vpop.f32.mrf.mxu0
    %v676 = vpop.f32.mrf.mxu0
    %v677 = vadd.f32 %v501, %v676
    %v678 = vpop.f32.mrf.mxu0
    %679 = vmatprep.mubr.bf16.mxu0 %v592
    %680 = vmatmul.mubr.bf16.gmra.mxu0 %v591
    %v681 = vpop.f32.mrf.mxu0
    %v682 = vadd.f32 %v505, %v681
    %v683 = vpop.f32.mrf.mxu0
    %v684 = vpop.f32.mrf.mxu0
    %v685 = vadd.f32 %v509, %v684
    %v686 = vpop.f32.mrf.mxu0
    %687 = vmatprep.mubr.bf16.mxu0 %v594
    %688 = vmatmul.mubr.bf16.gmra.mxu0 %v593
    %v689 = vpop.f32.mrf.mxu0
    %v690 = vadd.f32 %v513, %v689
    %v691 = vpop.f32.mrf.mxu0
    %v692 = vpop.f32.mrf.mxu0
    %v693 = vadd.f32 %v517, %v692
    %v694 = vpop.f32.mrf.mxu0
    %695 = vmatprep.mubr.bf16.mxu0 %v596
    %696 = vmatmul.mubr.bf16.gmra.mxu0 %v595
    %v697 = vpop.f32.mrf.mxu0
    %v698 = vadd.f32 %v521, %v697
    %v699 = vpop.f32.mrf.mxu0
    %v700 = vpop.f32.mrf.mxu0
    %v701 = vadd.f32 %v525, %v700
    %v702 = vpop.f32.mrf.mxu0
    %703 = vmatprep.mubr.bf16.mxu0 %v598
    %704 = vmatmul.mubr.bf16.gmra.mxu0 %v597
    %v705 = vpop.f32.mrf.mxu0
    %v706 = vadd.f32 %v529, %v705
    %v707 = vpop.f32.mrf.mxu0
    %v708 = vpop.f32.mrf.mxu0
    %v709 = vadd.f32 %v533, %v708
    %v710 = vpop.f32.mrf.mxu0
    %711 = vdwg.mxu0
    %v712 = vmax.f32 %v650, 0.0
    %v713 = vmax.f32 %v653, 0.0
    %v714 = vmax.f32 %v658, 0.0
    %v715 = vmax.f32 %v661, 0.0
    %v716 = vmax.f32 %v666, 0.0
    %v717 = vmax.f32 %v669, 0.0
    %v718 = vmax.f32 %v674, 0.0
    %v719 = vmax.f32 %v677, 0.0
    %v720 = vmax.f32 %v682, 0.0
    %v721 = vmax.f32 %v685, 0.0
    %v722 = vmax.f32 %v690, 0.0
    %v723 = vmax.f32 %v693, 0.0
    %v724 = vmax.f32 %v698, 0.0
    %v725 = vmax.f32 %v701, 0.0
    %v726 = vmax.f32 %v706, 0.0
    %v727 = vmax.f32 %v709, 0.0
    %728 = vset.pattern.permute.xlu0 3
    %729 = vperm.xlu0 %728, %v17
    %v730 = vpop.permute.xlu0 %729
    %732 = vset.pattern.permute.xlu0 3
    %733 = vperm.xlu0 %732, %v18
    %v734 = vpop.permute.xlu0 %733
    %736 = vset.pattern.permute.xlu0 3
    %737 = vperm.xlu0 %736, %v19
    %v738 = vpop.permute.xlu0 %737
    %740 = vset.pattern.permute.xlu0 3
    %741 = vperm.xlu0 %740, %v20
    %v742 = vpop.permute.xlu0 %741
    %744 = vset.pattern.permute.xlu0 3
    %745 = vperm.xlu0 %744, %v21
    %v746 = vpop.permute.xlu0 %745
    %748 = vset.pattern.permute.xlu0 3
    %749 = vperm.xlu0 %748, %v22
    %v750 = vpop.permute.xlu0 %749
    %752 = vset.pattern.permute.xlu0 3
    %753 = vperm.xlu0 %752, %v23
    %v754 = vpop.permute.xlu0 %753
    %756 = vset.pattern.permute.xlu0 3
    %757 = vperm.xlu0 %756, %v24
    %v758 = vpop.permute.xlu0 %757
    %760 = vset.pattern.permute.xlu0 3
    %761 = vperm.xlu0 %760, %v25
    %v762 = vpop.permute.xlu0 %761
    %764 = vset.pattern.permute.xlu0 3
    %765 = vperm.xlu0 %764, %v26
    %v766 = vpop.permute.xlu0 %765
    %768 = vset.pattern.permute.xlu0 3
    %769 = vperm.xlu0 %768, %v27
    %v770 = vpop.permute.xlu0 %769
    %772 = vset.pattern.permute.xlu0 3
    %773 = vperm.xlu0 %772, %v28
    %v774 = vpop.permute.xlu0 %773
    %776 = vset.pattern.permute.xlu0 3
    %777 = vperm.xlu0 %776, %v29
    %v778 = vpop.permute.xlu0 %777
    %780 = vset.pattern.permute.xlu0 3
    %781 = vperm.xlu0 %780, %v30
    %v782 = vpop.permute.xlu0 %781
    %784 = vset.pattern.permute.xlu0 3
    %785 = vperm.xlu0 %784, %v31
    %v786 = vpop.permute.xlu0 %785
    %788 = vset.pattern.permute.xlu0 3
    %789 = vperm.xlu0 %788, %v32
    %v790 = vpop.permute.xlu0 %789
    %v792 = vmul.f32 %v712, %v730
    %v793 = vmul.f32 %v713, %v734
    %v794 = vmul.f32 %v714, %v738
    %v795 = vmul.f32 %v715, %v742
    %v796 = vmul.f32 %v716, %v746
    %v797 = vmul.f32 %v717, %v750
    %v798 = vmul.f32 %v718, %v754
    %v799 = vmul.f32 %v719, %v758
    %v800 = vmul.f32 %v720, %v762
    %v801 = vmul.f32 %v721, %v766
    %v802 = vmul.f32 %v722, %v770
    %v803 = vmul.f32 %v723, %v774
    %v804 = vmul.f32 %v724, %v778
    %v805 = vmul.f32 %v725, %v782
    %v806 = vmul.f32 %v726, %v786
    %v807 = vmul.f32 %v727, %v790
    %v808 = vadd.f32 %v792, %v793
    %v809 = vadd.f32 %v808, %v794
    %v810 = vadd.f32 %v809, %v795
    %v811 = vadd.f32 %v810, %v796
    %v812 = vadd.f32 %v811, %v797
    %v813 = vadd.f32 %v812, %v798
    %v814 = vadd.f32 %v813, %v799
    %v815 = vadd.f32 %v814, %v800
    %v816 = vadd.f32 %v815, %v801
    %v817 = vadd.f32 %v816, %v802
    %v818 = vadd.f32 %v817, %v803
    %v819 = vadd.f32 %v818, %v804
    %v820 = vadd.f32 %v819, %v805
    %v821 = vadd.f32 %v820, %v806
    %v822 = vadd.f32 %v821, %v807
    %v823 = vrot.slane %v822, 4
    %v824 = vadd.f32 %v822, %v823
    %v825 = vrot.slane %v824, 2
    %v826 = vadd.f32 %v824, %v825
    %v827 = vrot.slane %v826, 1
    %v828 = vadd.f32 %v826, %v827
    %829 = vset.pattern.permute.xlu0 4
    %830 = vperm.xlu0 %829, %v17
    %v831 = vpop.permute.xlu0 %830
    %v833 = vadd.f32 %v828, %v831
    %834 = vst [vmem:[#allocation2] sm:$0x1] %v833
    // Predicated region
    $region14: #{tpu_custom_call.1} parent=1 // pred_check
      _
    $region15: #{tpu_custom_call.1} parent=1 // pred_check_branch
      %836 = sbr.rel (0) target = $region17
    $region16: #{tpu_custom_call.1} parent=1 // pred_region
      %s838 = ssub.s32 16, 16
      %839 = vsyncadd [#allocation3], %s838
      %s841 = sshll.u32 [#allocation2], 4
      %s842 = int_to_ptr.vmem [resolvable:$true] %s841
      %844 = dma.vmem_to_hbm [thread:$0]  %s842, 16, %s3, [#allocation3]
    $region17: #{tpu_custom_call.1} parent=1 // pred_fallthru
      _
    // Predicated region
    $region18: #{tpu_custom_call.1} parent=1 // pred_check
      _
    $region19: #{tpu_custom_call.1} parent=1 // pred_check_branch
      %846 = sbr.rel (0) target = $region21
    $region20: #{tpu_custom_call.1} parent=1 // pred_region
      %847 = dma.done [#allocation3], 16
    $region21: #{tpu_custom_call.1} parent=1 // pred_fallthru
      _
    %848 = vsyncpa [#allocation3], 1

</llo_original>
